<compile_context>
chip_gen: v5e
topology: v5e:2x2
jax: 0.10.0
libtpu: 0.0.40
codegen_flags: <defaults>
</compile_context>

<pallas_src>
import functools

import jax
import jax.numpy as jnp
from jax.experimental import pallas as pl
from jax.experimental.pallas import tpu as pltpu


def _group_norm_kernel(x_ref, gamma_ref, beta_ref, o_ref, *, eps):
    # x_ref block: (1, Gb, rows, lanes) — Gb groups of one batch element,
    # rows = Cg*S (sublane axis), lanes = H*W/S (lane axis).
    x = x_ref[...]
    xf = x.astype(jnp.float32)
    n_elem = xf.shape[2] * xf.shape[3]
    inv_n = 1.0 / float(n_elem)

    # One-pass group reduction: mean / biased variance from sum and sum(x^2).
    s = jnp.sum(xf, axis=(2, 3), keepdims=True)         # (1, Gb, 1, 1)
    ss = jnp.sum(xf * xf, axis=(2, 3), keepdims=True)   # (1, Gb, 1, 1)
    mean = s * inv_n
    var = jnp.maximum(ss * inv_n - mean * mean, 0.0)     # clamp: cancellation safety
    inv_std = jax.lax.rsqrt(var + eps)

    # gamma/beta arrive already sliced to this block's groups.
    g = gamma_ref[...].astype(jnp.float32)               # (1, Gb, rows, 1)
    b = beta_ref[...].astype(jnp.float32)                # (1, Gb, rows, 1)

    # Fold normalization + affine into per-channel scale/bias:
    # per-element work is one mul + one add.
    scale = inv_std * g
    bias = b - mean * scale

    if o_ref.dtype == jnp.float32:
        o_ref[...] = xf * scale + bias
    else:
        # Keep the elementwise path in the (narrow) I/O dtype; reductions above
        # already ran in f32.
        o_ref[...] = (x * scale.astype(x.dtype) + bias.astype(x.dtype)).astype(o_ref.dtype)


def _choose_spatial_fold(cg, hw, sublanes):
    """Largest-fill spatial fold S: rows = cg*S, lanes = hw/S stays lane-dense."""
    best_s, best_frac = 1, None
    for s in range(1, hw + 1):
        if hw % s:
            continue
        lane = hw // s
        if s > 1 and lane % 128 != 0:
            continue  # never shrink the lane axis below / off a 128 multiple
        rows = cg * s
        frac = (-(-rows // sublanes) * sublanes) / rows  # padded rows / real rows
        if best_frac is None or frac < best_frac:
            best_s, best_frac = s, frac
        if frac == 1.0:
            break
    return best_s


def group_norm(x, gamma, beta, *, num_groups, eps=1e-6):
    """GroupNorm forward. x: (N, C, H, W), gamma/beta: (C,)."""
    N, C, H, W = x.shape
    G = num_groups
    assert C % G == 0, "channels must be divisible by groups"
    Cg = C // G
    HW = H * W

    itemsize = jnp.dtype(x.dtype).itemsize
    sublanes = {4: 8, 2: 16, 1: 32}.get(itemsize, 8)

    # --- Layout: fold a spatial factor into the sublane axis when Cg is small,
    # keeping the lane axis a multiple of 128 (or untouched). ---
    S = _choose_spatial_fold(Cg, HW, sublanes)
    rows = Cg * S
    lanes = HW // S

    xg = x.reshape(N, G, rows, lanes)
    gamma4 = gamma.reshape(1, G, Cg, 1)
    beta4 = beta.reshape(1, G, Cg, 1)
    if S > 1:
        gamma4 = jnp.repeat(gamma4, S, axis=2)   # (1, G, rows, 1)
        beta4 = jnp.repeat(beta4, S, axis=2)

    # --- Block sizing from the real VMEM footprint:
    #   2x double-buffered input + 2x double-buffered output (x.dtype)
    #   + ~3 f32 in-kernel temporaries, all over the sublane-padded block. ---
    rows_padded = -(-rows // sublanes) * sublanes
    group_block_elems = rows_padded * lanes
    bytes_per_group = group_block_elems * (4 * itemsize + 3 * 4)
    budget_bytes = 20 << 20                      # against a 32 MiB scoped limit
    Gb = max(1, min(G, budget_bytes // max(bytes_per_group, 1)))

    # Guarantee enough parallel grid steps (v7x has 2 TensorCores; also gives
    # the pipeline a steady state) without shrinking blocks more than needed.
    while Gb > 1 and N * pl.cdiv(G, Gb) < 4:
        Gb = pl.cdiv(Gb, 2)

    vmem_limit = 32 << 20
    if bytes_per_group + (2 << 20) > vmem_limit:
        # TODO(synk): a single group exceeds the scoped VMEM budget — a two-pass
        # spatially-tiled reduction (HW grid axis marked "arbitrary" with
        # sum/sumsq scratch + normalize pass) is needed; best-effort raise here.
        vmem_limit = min(bytes_per_group + (4 << 20), 100 << 20)

    grid = (N, pl.cdiv(G, Gb))
    kernel = functools.partial(_group_norm_kernel, eps=eps)

    cost = pl.CostEstimate(
        flops=6 * N * C * H * W,
        transcendentals=N * G,
        bytes_accessed=2 * N * C * H * W * itemsize + 2 * C * 4,
    )

    out = pl.pallas_call(
        kernel,
        out_shape=jax.ShapeDtypeStruct((N, G, rows, lanes), x.dtype),
        grid_spec=pltpu.PrefetchScalarGridSpec(
            num_scalar_prefetch=0,
            grid=grid,
            in_specs=[
                # (batch, group-block) slab of the input, lane-dense last dim.
                pl.BlockSpec((1, Gb, rows, lanes), lambda n, j: (n, j, 0, 0)),
                # gamma/beta: per-block slices; Pallas clips the tail block.
                pl.BlockSpec((1, Gb, rows, 1), lambda n, j: (0, j, 0, 0)),
                pl.BlockSpec((1, Gb, rows, 1), lambda n, j: (0, j, 0, 0)),
            ],
            out_specs=pl.BlockSpec((1, Gb, rows, lanes), lambda n, j: (n, j, 0, 0)),
        ),
        compiler_params=pltpu.CompilerParams(
            dimension_semantics=("parallel", "parallel"),
            vmem_limit_bytes=vmem_limit,
        ),
        cost_estimate=cost,
    )(xg, gamma4, beta4)

    return out.reshape(N, C, H, W)


def _group_norm_ref(x, gamma, beta, *, num_groups, eps=1e-6):
    """Plain-JAX reference (mirrors torch.nn.GroupNorm forward)."""
    N, C, H, W = x.shape
    G = num_groups
    xg = x.reshape(N, G, C // G, H, W).astype(jnp.float32)
    mean = xg.mean(axis=(2, 3, 4), keepdims=True)
    var = ((xg - mean) ** 2).mean(axis=(2, 3, 4), keepdims=True)
    xn = (xg - mean) / jnp.sqrt(var + eps)
    xn = xn.reshape(N, C, H, W)
    return (xn * gamma.reshape(1, C, 1, 1) + beta.reshape(1, C, 1, 1)).astype(x.dtype)


if __name__ == "__main__":
    # Small shapes consistent with the module: batch=2, channels=4, spatial=16.
    N, C, H, W = 2, 4, 16, 16
    GROUPS = 2

    key = jax.random.PRNGKey(0)
    x = jax.random.normal(key, (N, C, H, W), dtype=jnp.float32)

    # nn.GroupNorm init is gamma=1, beta=0; perturb so the affine path matters.
    gamma = 1.0 + 0.1 * jnp.arange(C, dtype=jnp.float32)
    beta = 0.05 * jnp.arange(C, dtype=jnp.float32)

    out = group_norm(x, gamma, beta, num_groups=GROUPS, eps=1e-6)
    out = jax.block_until_ready(out)

    ref = _group_norm_ref(x, gamma, beta, num_groups=GROUPS, eps=1e-6)
    assert jnp.allclose(out, ref, atol=1e-4, rtol=1e-5), "mismatch vs reference"

    print("KERNEL_OK")
</pallas_src>

<mosaic_0001>
module attributes {stable_mosaic.version = 11 : i64} {
  func.func @_group_norm_kernel(%arg0: i32, %arg1: i32, %arg2: memref<1x1x4x128xf32, #tpu.memory_space<vmem>>, %arg3: memref<1x1x4x1xf32, #tpu.memory_space<vmem>>, %arg4: memref<1x1x4x1xf32, #tpu.memory_space<vmem>>, %arg5: memref<1x1x4x128xf32, #tpu.memory_space<vmem>>) attributes {dimension_semantics = [#tpu.dimension_semantics<parallel>, #tpu.dimension_semantics<parallel>], iteration_bounds = array<i64: 2, 2>, scalar_prefetch = 0 : i64, scratch_operands = 0 : i64, tpu.core_type = #tpu.core_type<tc>, window_params = [{transform_indices = @transform_0, window_bounds = array<i64: 1, 1, 4, 128>}, {transform_indices = @transform_1, window_bounds = array<i64: 1, 1, 4, 1>}, {transform_indices = @transform_2, window_bounds = array<i64: 1, 1, 4, 1>}, {transform_indices = @transform_3, window_bounds = array<i64: 1, 1, 4, 128>}]} {
    %c0 = arith.constant 0 : index
    %c0_0 = arith.constant 0 : index
    %c0_1 = arith.constant 0 : index
    %c0_2 = arith.constant 0 : index
    %0 = vector.load %arg2[%c0, %c0_0, %c0_1, %c0_2] : memref<1x1x4x128xf32, #tpu.memory_space<vmem>>, vector<1x1x4x128xf32>
    %cst = arith.constant dense<0.000000e+00> : vector<1x1xf32>
    %1 = vector.multi_reduction <add>, %0, %cst [2, 3] : vector<1x1x4x128xf32> to vector<1x1xf32>
    %2 = vector.shape_cast %1 : vector<1x1xf32> to vector<1x1x1x1xf32>
    %3 = arith.mulf %0, %0 : vector<1x1x4x128xf32>
    %cst_3 = arith.constant dense<0.000000e+00> : vector<1x1xf32>
    %4 = vector.multi_reduction <add>, %3, %cst_3 [2, 3] : vector<1x1x4x128xf32> to vector<1x1xf32>
    %5 = vector.shape_cast %4 : vector<1x1xf32> to vector<1x1x1x1xf32>
    %cst_4 = arith.constant 0.001953125 : f32
    %6 = vector.broadcast %cst_4 : f32 to vector<1x1x1x1xf32>
    %7 = arith.mulf %2, %6 : vector<1x1x1x1xf32>
    %cst_5 = arith.constant 0.001953125 : f32
    %8 = vector.broadcast %cst_5 : f32 to vector<1x1x1x1xf32>
    %9 = arith.mulf %5, %8 : vector<1x1x1x1xf32>
    %10 = arith.mulf %7, %7 : vector<1x1x1x1xf32>
    %11 = arith.subf %9, %10 : vector<1x1x1x1xf32>
    %cst_6 = arith.constant 0.000000e+00 : f32
    %12 = vector.broadcast %cst_6 : f32 to vector<1x1x1x1xf32>
    %13 = arith.maximumf %11, %12 : vector<1x1x1x1xf32>
    %cst_7 = arith.constant 9.99999997E-7 : f32
    %14 = vector.broadcast %cst_7 : f32 to vector<1x1x1x1xf32>
    %15 = arith.addf %13, %14 : vector<1x1x1x1xf32>
    %16 = math.rsqrt %15 : vector<1x1x1x1xf32>
    %c0_8 = arith.constant 0 : index
    %c0_9 = arith.constant 0 : index
    %c0_10 = arith.constant 0 : index
    %c0_11 = arith.constant 0 : index
    %17 = vector.load %arg3[%c0_8, %c0_9, %c0_10, %c0_11] : memref<1x1x4x1xf32, #tpu.memory_space<vmem>>, vector<1x1x4x1xf32>
    %c0_12 = arith.constant 0 : index
    %c0_13 = arith.constant 0 : index
    %c0_14 = arith.constant 0 : index
    %c0_15 = arith.constant 0 : index
    %18 = vector.load %arg4[%c0_12, %c0_13, %c0_14, %c0_15] : memref<1x1x4x1xf32, #tpu.memory_space<vmem>>, vector<1x1x4x1xf32>
    %19 = vector.broadcast %16 : vector<1x1x1x1xf32> to vector<1x1x4x1xf32>
    %20 = arith.mulf %19, %17 : vector<1x1x4x1xf32>
    %21 = vector.broadcast %7 : vector<1x1x1x1xf32> to vector<1x1x4x1xf32>
    %22 = arith.mulf %21, %20 : vector<1x1x4x1xf32>
    %23 = arith.subf %18, %22 : vector<1x1x4x1xf32>
    %24 = vector.broadcast %20 : vector<1x1x4x1xf32> to vector<1x1x4x128xf32>
    %25 = arith.mulf %0, %24 : vector<1x1x4x128xf32>
    %26 = vector.broadcast %23 : vector<1x1x4x1xf32> to vector<1x1x4x128xf32>
    %27 = arith.addf %25, %26 : vector<1x1x4x128xf32>
    %c0_16 = arith.constant 0 : index
    %c0_17 = arith.constant 0 : index
    %c0_18 = arith.constant 0 : index
    %c0_19 = arith.constant 0 : index
    %28 = vector.load %arg5[%c0_16, %c0_17, %c0_18, %c0_19] : memref<1x1x4x128xf32, #tpu.memory_space<vmem>>, vector<1x1x4x128xf32>
    tpu.vector_store %arg5[%c0_16, %c0_17, %c0_18, %c0_19], %27 {strides = array<i32>} : memref<1x1x4x128xf32, #tpu.memory_space<vmem>>, vector<1x1x4x128xf32>,
    return
  }
  func.func @transform_0(%arg0: i32, %arg1: i32) -> (i32, i32, i32, i32) {
    %c0_i32 = arith.constant 0 : i32
    %c0_i32_0 = arith.constant 0 : i32
    %c0_i32_1 = arith.constant 0 : i32
    return %arg0, %arg1, %c0_i32, %c0_i32_0 : i32, i32, i32, i32
  }
  func.func @transform_1(%arg0: i32, %arg1: i32) -> (i32, i32, i32, i32) {
    %c0_i32 = arith.constant 0 : i32
    %c0_i32_0 = arith.constant 0 : i32
    %c0_i32_1 = arith.constant 0 : i32
    %c0_i32_2 = arith.constant 0 : i32
    return %c0_i32, %arg1, %c0_i32_0, %c0_i32_1 : i32, i32, i32, i32
  }
  func.func @transform_2(%arg0: i32, %arg1: i32) -> (i32, i32, i32, i32) {
    %c0_i32 = arith.constant 0 : i32
    %c0_i32_0 = arith.constant 0 : i32
    %c0_i32_1 = arith.constant 0 : i32
    %c0_i32_2 = arith.constant 0 : i32
    return %c0_i32, %arg1, %c0_i32_0, %c0_i32_1 : i32, i32, i32, i32
  }
  func.func @transform_3(%arg0: i32, %arg1: i32) -> (i32, i32, i32, i32) {
    %c0_i32 = arith.constant 0 : i32
    %c0_i32_0 = arith.constant 0 : i32
    %c0_i32_1 = arith.constant 0 : i32
    return %arg0, %arg1, %c0_i32, %c0_i32_0 : i32, i32, i32, i32
  }
}

</mosaic_0001>

<llo_original>
// kernel: tpu_custom_call.1
$region0: #{tpu_custom_call.1}
  #allocation0 [shape = 'u32[]', space=smem, size = 0x4, offset = 0x4, fixed_abs, tag = 'smem constant byte address 0x4 - core index']
  #allocation1 [shape = 'u32[72,128]{1,0:T(1,128)}', space=vmem, size = 0x9000, scoped, tag = 'internal scratch']
  %s0 = inlined_call_operand.vmem [shape: f32[2,2,4,128], index: 0, kind: input, shape index: {}]
  %s1 = inlined_call_operand.vmem [shape: f32[1,2,4,1], index: 1, kind: input, shape index: {}]
  %s2 = inlined_call_operand.vmem [shape: f32[1,2,4,1], index: 2, kind: input, shape index: {}]
  %s3 = inlined_call_operand.hbm [shape: f32[2,2,4,128], index: 3, kind: output, shape index: {}]
  %s4 = sld [smem:[#allocation0]]
  $region45: #{tpu_custom_call.1} parent=0
    _
  %s6 = ssub.s32 1, %s4
  %s7 = scalar_select 0, %s6, %s4
  $region1: #{tpu_custom_call.1} parent=0
    #allocation2 [shape = 'u8[4096]{0}', space=vmem, size = 0x1000, scoped, tag = 'output window, operand 0']
    #allocation3 [shape = 's32[2]{0}', space=sflag, size = 0x8, scoped, tag = 'scoped memory for tpu_custom_call.1']
    %8 = vsyncpa [#allocation3], 0
    %s9 = scalar_lea.sflag [#allocation3], 1
    %10 = vsyncpa %s9, 0
    loop: start=0, step=1, limit=6
    $region2: #{tpu_custom_call.1} parent=1 // loop_pre_header
      _
    $region3: #{tpu_custom_call.1} parent=1 // loop_header
      %s12 = sphi 0, %s16
      %p13 = scmp.ge.s32.totalorder %s12, 6
      %s19 = sphi 0, %s31
      %s20 = sphi 0, %s27
      %s21 = sphi 0, %s19
      %s22 = sphi 0, %s20
      %s23 = sphi 0, %s21
      %s24 = sphi 0, %s22
      %s36 = sphi 0, %s38
      %s39 = sphi 0, %s36
      %s40 = sphi 0, %s39
      %s56 = sphi 0, %s40
      %s62 = sphi 0, %s64
      %s65 = sphi 0, %s62
      %s66 = sphi 0, %s65
      %s82 = sphi 0, %s66
      %s88 = sphi 0, %s90
      %s91 = sphi 0, %s88
      %s92 = sphi 0, %s91
      %s108 = sphi 0, %s92
      %s116 = sphi 0, %s118
      %s119 = sphi 0, %s116
      %s120 = sphi 0, %s119
      %s136 = sphi 0, %s120
    $region4: #{tpu_custom_call.1} parent=1 // loop_header_branch
      %15 = sbr.rel (%p13) target = $region8
    $region5: #{tpu_custom_call.1} parent=1 // loop_body
      %s17 = ssub.s32 %s12, 1
      %s18 = ssub.s32 %s12, 2
      %s25 = sadd.s32 1, %s20
      %p26 = scmp.ge.s32.totalorder %s25, 2
      %s27 = scalar_select %p26, 0, %s25
      %s28 = sadd.s32 1, %s19
      %s29 = scalar_select %p26, %s28, %s19
      %p30 = scmp.ge.s32.totalorder %s29, 2
      %s31 = scalar_select %p30, 0, %s29
      %s32 = ssub.s32 %s19, %s31
      %s33 = ssub.s32 %s20, %s27
      %s34 = sor.u32 %s32, %s33
      %p35 = scmp.eq.s32.totalorder %s34, 0
      %s37 = sadd.s32 %s36, 1
      %s38 = scalar_select %p35, %s36, %s37
      %p41 = pneg %p35
      %p42 = scmp.eq.s32.totalorder %s12, 3
      %p43 = por %p41, %p42
      %p44 = scmp.ne.s32.totalorder %s36, %s39
      %p45 = scmp.eq.s32.totalorder %s12, 0
      %p46 = por %p44, %p45
      %p47 = scmp.ne.s32.totalorder %s36, %s39
      %p48 = scmp.eq.s32.totalorder %s17, 3
      %p49 = por %p47, %p48
      %p50 = scmp.ne.s32.totalorder %s39, %s40
      %p51 = scmp.eq.s32.totalorder %s17, 0
      %p52 = por %p50, %p51
      %p53 = scmp.ne.s32.totalorder %s39, %s40
      %p54 = scmp.eq.s32.totalorder %s18, 3
      %p55 = por %p53, %p54
      %p57 = scmp.ne.s32.totalorder %s40, %s56
      %p58 = scmp.eq.s32.totalorder %s18, 0
      %p59 = por %p57, %p58
      %s60 = ssub.s32 %s20, %s27
      %p61 = scmp.eq.s32.totalorder %s60, 0
      %s63 = sadd.s32 %s62, 1
      %s64 = scalar_select %p61, %s62, %s63
      %p67 = pneg %p61
      %p68 = scmp.eq.s32.totalorder %s12, 3
      %p69 = por %p67, %p68
      %p70 = scmp.ne.s32.totalorder %s62, %s65
      %p71 = scmp.eq.s32.totalorder %s12, 0
      %p72 = por %p70, %p71
      %p73 = scmp.ne.s32.totalorder %s62, %s65
      %p74 = scmp.eq.s32.totalorder %s17, 3
      %p75 = por %p73, %p74
      %p76 = scmp.ne.s32.totalorder %s65, %s66
      %p77 = scmp.eq.s32.totalorder %s17, 0
      %p78 = por %p76, %p77
      %p79 = scmp.ne.s32.totalorder %s65, %s66
      %p80 = scmp.eq.s32.totalorder %s18, 3
      %p81 = por %p79, %p80
      %p83 = scmp.ne.s32.totalorder %s66, %s82
      %p84 = scmp.eq.s32.totalorder %s18, 0
      %p85 = por %p83, %p84
      %s86 = ssub.s32 %s20, %s27
      %p87 = scmp.eq.s32.totalorder %s86, 0
      %s89 = sadd.s32 %s88, 1
      %s90 = scalar_select %p87, %s88, %s89
      %p93 = pneg %p87
      %p94 = scmp.eq.s32.totalorder %s12, 3
      %p95 = por %p93, %p94
      %p96 = scmp.ne.s32.totalorder %s88, %s91
      %p97 = scmp.eq.s32.totalorder %s12, 0
      %p98 = por %p96, %p97
      %p99 = scmp.ne.s32.totalorder %s88, %s91
      %p100 = scmp.eq.s32.totalorder %s17, 3
      %p101 = por %p99, %p100
      %p102 = scmp.ne.s32.totalorder %s91, %s92
      %p103 = scmp.eq.s32.totalorder %s17, 0
      %p104 = por %p102, %p103
      %p105 = scmp.ne.s32.totalorder %s91, %s92
      %p106 = scmp.eq.s32.totalorder %s18, 3
      %p107 = por %p105, %p106
      %p109 = scmp.ne.s32.totalorder %s92, %s108
      %p110 = scmp.eq.s32.totalorder %s18, 0
      %p111 = por %p109, %p110
      %s112 = ssub.s32 %s19, %s31
      %s113 = ssub.s32 %s20, %s27
      %s114 = sor.u32 %s112, %s113
      %p115 = scmp.eq.s32.totalorder %s114, 0
      %s117 = sadd.s32 %s116, 1
      %s118 = scalar_select %p115, %s116, %s117
      %p121 = pneg %p115
      %p122 = scmp.eq.s32.totalorder %s12, 3
      %p123 = por %p121, %p122
      %p124 = scmp.ne.s32.totalorder %s116, %s119
      %p125 = scmp.eq.s32.totalorder %s12, 0
      %p126 = por %p124, %p125
      %p127 = scmp.ne.s32.totalorder %s116, %s119
      %p128 = scmp.eq.s32.totalorder %s17, 3
      %p129 = por %p127, %p128
      %p130 = scmp.ne.s32.totalorder %s119, %s120
      %p131 = scmp.eq.s32.totalorder %s17, 0
      %p132 = por %p130, %p131
      %p133 = scmp.ne.s32.totalorder %s119, %s120
      %p134 = scmp.eq.s32.totalorder %s18, 3
      %p135 = por %p133, %p134
      %p137 = scmp.ne.s32.totalorder %s120, %s136
      %p138 = scmp.eq.s32.totalorder %s18, 0
      %p139 = por %p137, %p138
      %p140 = scmp.le.s32.totalorder 1, %s12
      %p141 = scmp.lt.s32.totalorder %s12, 5
      %p142 = pnand %p140, %p141
      %p143 = pneg %p142
      // Predicated region
      $region9: #{tpu_custom_call.1} parent=5 // pred_check
        _
      $region10: #{tpu_custom_call.1} parent=5 // pred_check_branch
        %145 = sbr.rel (%p142) target = $region12
      $region11: #{tpu_custom_call.1} parent=5 // pred_region
        %s146 = ssub.s32 %s12, 1
      $region12: #{tpu_custom_call.1} parent=5 // pred_fallthru
        _
      %p147 = scmp.lt.s32.totalorder %s12, 4
      // Predicated region
      $region13: #{tpu_custom_call.1} parent=5 // pred_check
        %p148 = pneg %p147
      $region14: #{tpu_custom_call.1} parent=5 // pred_check_branch
        %150 = sbr.rel (%p148) target = $region16
      $region15: #{tpu_custom_call.1} parent=5 // pred_region
        // Predicated region
        $region17: #{tpu_custom_call.1} parent=15 // pred_check
          %p151 = pneg %p46
        $region18: #{tpu_custom_call.1} parent=15 // pred_check_branch
          %153 = sbr.rel (%p151) target = $region20
        $region19: #{tpu_custom_call.1} parent=15 // pred_region
          %p154 = scmp.lt.s32.totalorder %s19, 1
          %s155 = scalar_select %p154, %s19, 1
          %p156 = scmp.lt.s32.totalorder %s20, 1
          %s157 = scalar_select %p156, %s20, 1
          %s158 = smul.addr %s155, 2
          %s159 = sadd.s32 %s157, %s158
          %s160 = smul.addr %s159, 4
          %s161 = scalar_lea.vmem %s0, %s160
        $region20: #{tpu_custom_call.1} parent=15 // pred_fallthru
          _
        // Predicated region
        $region21: #{tpu_custom_call.1} parent=15 // pred_check
          %p162 = pneg %p72
        $region22: #{tpu_custom_call.1} parent=15 // pred_check_branch
          %164 = sbr.rel (%p162) target = $region24
        $region23: #{tpu_custom_call.1} parent=15 // pred_region
          %p165 = scmp.lt.s32.totalorder %s20, 1
          %s166 = scalar_select %p165, %s20, 1
          %s167 = smul.addr %s166, 4
          %s168 = scalar_lea.vmem %s1, %s167
        $region24: #{tpu_custom_call.1} parent=15 // pred_fallthru
          _
        // Predicated region
        $region25: #{tpu_custom_call.1} parent=15 // pred_check
          %p169 = pneg %p98
        $region26: #{tpu_custom_call.1} parent=15 // pred_check_branch
          %171 = sbr.rel (%p169) target = $region28
        $region27: #{tpu_custom_call.1} parent=15 // pred_region
          %p172 = scmp.lt.s32.totalorder %s20, 1
          %s173 = scalar_select %p172, %s20, 1
          %s174 = smul.addr %s173, 4
          %s175 = scalar_lea.vmem %s2, %s174
        $region28: #{tpu_custom_call.1} parent=15 // pred_fallthru
          _
      $region16: #{tpu_custom_call.1} parent=5 // pred_fallthru
        _
      %p176 = scmp.le.s32.totalorder 1, %s12
      %p177 = scmp.lt.s32.totalorder %s12, 5
      %p178 = pnand %p176, %p177
      %p179 = pneg %p178
      // Predicated region
      $region29: #{tpu_custom_call.1} parent=5 // pred_check
        _
      $region30: #{tpu_custom_call.1} parent=5 // pred_check_branch
        %181 = sbr.rel (%p178) target = $region32
      $region31: #{tpu_custom_call.1} parent=5 // pred_region
        %s182 = ssub.s32 %s12, 1
        %p183 = scmp.lt.s32.totalorder %s21, 1
        %s184 = scalar_select %p183, %s21, 1
        %p185 = scmp.lt.s32.totalorder %s22, 1
        %s186 = scalar_select %p185, %s22, 1
        %s187 = smul.addr %s184, 2
        %s188 = sadd.s32 %s186, %s187
        %s189 = smul.addr %s188, 4
        %s190 = scalar_lea.vmem %s0, %s189
        %p191 = pneg %p52
        %p192 = pneg %p49
        %p193 = scmp.lt.s32.totalorder %s22, 1
        %s194 = scalar_select %p193, %s22, 1
        %s195 = smul.addr %s194, 4
        %s196 = scalar_lea.vmem %s1, %s195
        %p197 = pneg %p78
        %p198 = pneg %p75
        %p199 = scmp.lt.s32.totalorder %s22, 1
        %s200 = scalar_select %p199, %s22, 1
        %s201 = smul.addr %s200, 4
        %s202 = scalar_lea.vmem %s2, %s201
        %p203 = pneg %p104
        %p204 = pneg %p101
        %p205 = pneg %p132
        %p206 = pneg %p129
        %s207 = sand.u32 %s119, 1
        %s208 = scalar_lea.sflag [#allocation3], %s207
        %s209 = sand.u32 %s119, 1
        %s210 = smul.addr %s209, 4
        %s211 = scalar_lea.vmem [#allocation2], %s210
        %p212 = scmp.lt.s32.totalorder %s21, 1
        %s213 = scalar_select %p212, %s21, 1
        %p214 = scmp.lt.s32.totalorder %s22, 1
        %s215 = scalar_select %p214, %s22, 1
        %s216 = smul.addr %s213, 2
        %s217 = sadd.s32 %s215, %s216
        %s218 = smul.addr %s217, 4
        %s219 = scalar_lea.vmem %s0, %s218
        %p220 = scmp.lt.s32.totalorder %s22, 1
        %s221 = scalar_select %p220, %s22, 1
        %s222 = smul.addr %s221, 4
        %s223 = scalar_lea.vmem %s1, %s222
        %p224 = scmp.lt.s32.totalorder %s22, 1
        %s225 = scalar_select %p224, %s22, 1
        %s226 = smul.addr %s225, 4
        %s227 = scalar_lea.vmem %s2, %s226
        %v228 = vld [vmem:[%s219] sm:$0xf]
        %vm229 = vcmask 1043456
        %v230 = vsel %vm229, %v228, 0.0
        %231 = vadd.xlane.f32.xlu0 %v230
        %v232 = vpop.xlane.xlu0 %231
        %v233 = vrot.slane %v232, 4
        %v234 = vadd.f32 %v232, %v233
        %v235 = vrot.slane %v234, 2
        %v236 = vadd.f32 %v234, %v235
        %v237 = vrot.slane %v236, 1
        %v238 = vadd.f32 %v236, %v237
        %v239 = vmul.f32 %v228, %v228
        %v240 = vsel %vm229, %v239, 0.0
        %241 = vadd.xlane.f32.xlu0 %v240
        %v242 = vpop.xlane.xlu0 %241
        %v243 = vrot.slane %v242, 4
        %v244 = vadd.f32 %v242, %v243
        %v245 = vrot.slane %v244, 2
        %v246 = vadd.f32 %v244, %v245
        %v247 = vrot.slane %v246, 1
        %v248 = vadd.f32 %v246, %v247
        %v249 = vmul.f32 %v238, 0.001953125
        %v250 = vmul.f32 %v248, 0.001953125
        %v251 = vmul.f32 %v249, %v249
        %v252 = vsub.f32 %v250, %v251
        %v253 = vmax.f32 %v252, 0.0
        %v254 = vadd.f32 %v253, 1e-06
        %v255 = vrsqrt.pop %v254
        %v256 = vmul.f32 %v255, %v254
        %v257 = vmul.f32 %v256, %v255
        %v258 = vmul.f32 0.5, %v257
        %v259 = vsub.f32 1.5, %v258
        %v260 = vmul.f32 %v255, %v259
        %vm261 = vweird.f32 %v254
        %vm262 = vweird.f32 %v255
        %vm263 = vmor %vm261, %vm262
        %v264 = vsel %vm263, %v255, %v260
        %v265 = vld [vmem:[%s223] sm:$0xf]
        %v266 = vld [vmem:[%s227] sm:$0xf]
        %v267 = vmul.f32 %v264, %v265
        %v268 = vmul.f32 %v249, %v267
        %v269 = vsub.f32 %v266, %v268
        %271 = vset.pattern.permute.xlu0 0
        %272 = vperm.xlu0 %271, %v267
        %v273 = vpop.permute.xlu0 %272
        %v275 = vmul.f32 %v228, %v273
        %277 = vset.pattern.permute.xlu0 0
        %278 = vperm.xlu0 %277, %v269
        %v279 = vpop.permute.xlu0 %278
        %v281 = vadd.f32 %v275, %v279
        %282 = vst [vmem:[%s211] sm:$0xf] %v281
        %s283 = sand.u32 %s119, 1
        %s284 = scalar_lea.sflag [#allocation3], %s283
        %s285 = sand.u32 %s119, 1
        %s286 = smul.addr %s285, 4
        %s287 = scalar_lea.vmem [#allocation2], %s286
        // Predicated region
        $region33: #{tpu_custom_call.1} parent=31 // pred_check
          %p288 = pneg %p129
        $region34: #{tpu_custom_call.1} parent=31 // pred_check_branch
          %290 = sbr.rel (%p288) target = $region36
        $region35: #{tpu_custom_call.1} parent=31 // pred_region
          %292 = vsyncadd %s284, 0
          %s293 = smul.addr %s21, 2
          %s294 = sadd.s32 %s22, %s293
          %s295 = smul.addr %s294, 4
          %s296 = scalar_lea.hbm %s3, %s295
          %s298 = sshll.u32 %s287, 4
          %s299 = int_to_ptr.vmem [resolvable:$true] %s298
          %s300 = sshll.u32 %s296, 4
          %s301 = int_to_ptr.hbm [resolvable:$true] %s300
          %303 = dma.vmem_to_hbm [thread:$0]  %s299, 64, %s301, %s284
        $region36: #{tpu_custom_call.1} parent=31 // pred_fallthru
          _
      $region32: #{tpu_custom_call.1} parent=5 // pred_fallthru
        _
      %p304 = scmp.le.s32.totalorder 2, %s12
      // Predicated region
      $region37: #{tpu_custom_call.1} parent=5 // pred_check
        %p305 = pneg %p304
      $region38: #{tpu_custom_call.1} parent=5 // pred_check_branch
        %307 = sbr.rel (%p305) target = $region40
      $region39: #{tpu_custom_call.1} parent=5 // pred_region
        %s308 = ssub.s32 %s12, 2
        // Predicated region
        $region41: #{tpu_custom_call.1} parent=39 // pred_check
          %p309 = pneg %p135
        $region42: #{tpu_custom_call.1} parent=39 // pred_check_branch
          %311 = sbr.rel (%p309) target = $region44
        $region43: #{tpu_custom_call.1} parent=39 // pred_region
          %s312 = sand.u32 %s120, 1
          %s313 = scalar_lea.sflag [#allocation3], %s312
          %s314 = sand.u32 %s120, 1
          %s315 = smul.addr %s314, 4
          %s316 = scalar_lea.vmem [#allocation2], %s315
          %318 = dma.done %s313, 64
        $region44: #{tpu_custom_call.1} parent=39 // pred_fallthru
          _
      $region40: #{tpu_custom_call.1} parent=5 // pred_fallthru
        _
    $region6: #{tpu_custom_call.1} parent=1 // loop_footer
      %s16 = sadd.s32 1, %s12
    $region7: #{tpu_custom_call.1} parent=1 // loop_footer_branch
      %11 = sbr.rel target = $region3
    $region8: #{tpu_custom_call.1} parent=1 // loop_exit
      _
    %319 = vsyncpa [#allocation3], 1
    %s320 = scalar_lea.sflag [#allocation3], 1
    %321 = vsyncpa %s320, 1

</llo_original>
